<compile_context>
chip_gen: v6e
topology: v6e:2x2x1
jax: 0.10.0
libtpu: 0.0.40
codegen_flags: <defaults>
</compile_context>

<pallas_src>
import functools

import jax
import jax.numpy as jnp
from jax.experimental import pallas as pl
from jax.experimental.pallas import tpu as pltpu

_LANE = 128        # vreg lane width (last dim)
_SUBLANE = 8       # vreg sublane width (second-to-last dim)
_MAX_TILE_B = 2048


def _round_up(n, m):
    return ((n + m - 1) // m) * m


def _num_tensorcores():
    # Multi-TC (megacore) chips benefit from >= num_tc grid steps on the
    # "parallel" batch axis; single-TC chips (v5e/v6e) would just pay the
    # per-step overhead, so report 1 there.
    try:
        kind = jax.devices()[0].device_kind.lower()
    except Exception:
        return 1
    for tag in ("v7", "v5p", "v4", "v3"):
        if tag in kind:
            return 2
    return 1


def generator_kernel(x_ref, w_ref, b_ref, o_ref, *, compute_dtype):
    # x_ref: (TB, L) input dtype     w_ref: (L, Lp) compute dtype
    # b_ref: (1, Lp) f32             o_ref: (TB, Lp) output dtype
    x = x_ref[...].astype(compute_dtype)                   # in-kernel cast (VPU)
    z = jnp.dot(x, w_ref[...], preferred_element_type=jnp.float32)  # MXU, f32 acc
    z = z + b_ref[...]                                     # f32 bias add
    # sigmoid(z) = 1 / (1 + exp(-z)): exp and approx reciprocal both on the
    # EUP slot, keeping the VALU free while mem-bound.
    sig = pl.reciprocal(1.0 + jnp.exp(-z), approx=True)
    o_ref[...] = sig.astype(o_ref.dtype)                   # lane-dense unmasked vst


def generator_forward(x, w_t, b, *, compute_dtype=jnp.float32, tile_b=None):
    """sigmoid(x @ w_t + b).  x: (B, L), w_t: (L, L) laid out (in, out), b: (L,)."""
    B, L = x.shape
    assert w_t.shape == (L, L) and b.shape == (L,)

    Lp = _round_up(max(L, _LANE), _LANE)       # lane-dense output feature dim
    B8 = _round_up(B, _SUBLANE)                # sublane-aligned batch

    if tile_b is None:
        num_tc = _num_tensorcores()
        steps = -(-B8 // _MAX_TILE_B)          # ceil div, >= 1
        # Split across TensorCores only when each core gets >= 256 rows.
        if num_tc > 1 and B8 >= num_tc * 256 and steps % num_tc:
            steps = _round_up(steps, num_tc)
        tile_b = _round_up(-(-B8 // steps), _SUBLANE)   # balanced: <8 pad rows/step
    assert tile_b % _SUBLANE == 0, "tile_b must be a multiple of 8 (sublanes)"
    B_pad = _round_up(B8, tile_b)
    grid = (B_pad // tile_b,)

    # Only the tiny constant operands get padded/cast in the wrapper.  x is
    # only row-padded (batch) when needed, in its own dtype.
    x_p = x if B_pad == B else jnp.zeros((B_pad, L), x.dtype).at[:B].set(x)
    w_p = jnp.zeros((L, Lp), compute_dtype).at[:, :L].set(w_t.astype(compute_dtype))
    b_p = jnp.zeros((1, Lp), jnp.float32).at[0, :L].set(b.astype(jnp.float32))

    out_dtype = x.dtype
    cost = pl.CostEstimate(
        flops=2 * B_pad * L * Lp,
        transcendentals=2 * B_pad * Lp,        # exp + approx reciprocal
        bytes_accessed=(x_p.size * x_p.dtype.itemsize
                        + w_p.size * jnp.dtype(compute_dtype).itemsize
                        + b_p.size * 4
                        + B_pad * Lp * jnp.dtype(out_dtype).itemsize),
    )

    w_spec_kwargs = {}
    compiler_kwargs = dict(dimension_semantics=("parallel",))
    if Lp >= 2048:
        # Large-L reuse path: single-buffer the resident weight and raise the
        # scoped-VMEM cap (v7x has 64 MiB physical VMEM).  Never triggered at
        # the small shapes exercised below.
        w_spec_kwargs["pipeline_mode"] = pl.Buffered(1)
        compiler_kwargs["vmem_limit_bytes"] = 60 << 20

    out_p = pl.pallas_call(
        functools.partial(generator_kernel, compute_dtype=compute_dtype),
        out_shape=jax.ShapeDtypeStruct((B_pad, Lp), out_dtype),
        grid=grid,
        in_specs=[
            pl.BlockSpec((tile_b, L), lambda i: (i, 0)),               # x (pipelined)
            pl.BlockSpec((L, Lp), lambda i: (0, 0), **w_spec_kwargs),  # W  (resident)
            pl.BlockSpec((1, Lp), lambda i: (0, 0)),                   # b  (resident)
        ],
        out_specs=pl.BlockSpec((tile_b, Lp), lambda i: (i, 0)),
        compiler_params=pltpu.CompilerParams(**compiler_kwargs),
        cost_estimate=cost,
    )(x_p, w_p, b_p)

    return out_p[:B, :L]


def reference_forward(x, w_t, b):
    return jax.nn.sigmoid(x @ w_t + b[None, :])


if __name__ == "__main__":
    key = jax.random.PRNGKey(0)
    k_x, k_w, k_b = jax.random.split(key, 3)

    input_length = 32    # Generator(input_length=32)
    batch = 8

    # Deterministic init mimicking nn.Linear uniform(-1/sqrt(in), 1/sqrt(in))
    bound = 1.0 / jnp.sqrt(jnp.float32(input_length))
    w = jax.random.uniform(k_w, (input_length, input_length), jnp.float32,
                           minval=-bound, maxval=bound)    # PyTorch (out, in)
    b = jax.random.uniform(k_b, (input_length,), jnp.float32,
                           minval=-bound, maxval=bound)
    w_t = w.T                                              # (in, out) for x @ W^T
    x = jax.random.normal(k_x, (batch, input_length), jnp.float32)

    ref = reference_forward(x, w_t, b)

    # Default f32 path (parity with the PyTorch reference; approx reciprocal
    # only introduces ~1e-4 abs error on a (0,1) sigmoid output).
    out = jax.block_until_ready(generator_forward(x, w_t, b))
    assert out.shape == (batch, input_length)
    assert out.dtype == x.dtype
    assert jnp.allclose(out, ref, atol=2e-3, rtol=2e-3), "f32 mismatch"

    # bf16 MXU operand path (v6e/v7x fast path), f32 accumulate + f32 sigmoid.
    out_bf16 = jax.block_until_ready(
        generator_forward(x, w_t, b, compute_dtype=jnp.bfloat16))
    assert jnp.allclose(out_bf16, ref, atol=2e-2, rtol=2e-2), "bf16 mismatch"

    # Multi-step grid + batch pad/slice path (B=40, tile_b=16 -> 3 grid steps,
    # B_pad=48); exercises the pipelined x tiles and row-pad slice-off.
    x_big = jax.random.normal(k_x, (40, input_length), jnp.float32)
    out_big = jax.block_until_ready(
        generator_forward(x_big, w_t, b, tile_b=16))
    assert jnp.allclose(out_big, reference_forward(x_big, w_t, b),
                        atol=2e-3, rtol=2e-3), "multi-tile mismatch"

    print("KERNEL_OK")
</pallas_src>

<mosaic_0001>
module attributes {stable_mosaic.version = 11 : i64} {
  func.func @generator_kernel(%arg0: i32, %arg1: memref<8x32xf32, #tpu.memory_space<vmem>>, %arg2: memref<32x128xf32, #tpu.memory_space<vmem>>, %arg3: memref<1x128xf32, #tpu.memory_space<vmem>>, %arg4: memref<8x128xf32, #tpu.memory_space<vmem>>) attributes {dimension_semantics = [#tpu.dimension_semantics<parallel>], iteration_bounds = array<i64: 1>, scalar_prefetch = 0 : i64, scratch_operands = 0 : i64, tpu.core_type = #tpu.core_type<tc>, window_params = [{transform_indices = @transform_0, window_bounds = array<i64: 8, 32>}, {pipeline_mode = #tpu.pipeline_mode<synchronous>, transform_indices = @transform_1, window_bounds = array<i64: 32, 128>}, {pipeline_mode = #tpu.pipeline_mode<synchronous>, transform_indices = @transform_2, window_bounds = array<i64: 1, 128>}, {transform_indices = @transform_3, window_bounds = array<i64: 8, 128>}]} {
    %c0 = arith.constant 0 : index
    %c0_0 = arith.constant 0 : index
    %0 = vector.load %arg1[%c0, %c0_0] : memref<8x32xf32, #tpu.memory_space<vmem>>, vector<8x32xf32>
    %c0_1 = arith.constant 0 : index
    %c0_2 = arith.constant 0 : index
    %1 = vector.load %arg2[%c0_1, %c0_2] : memref<32x128xf32, #tpu.memory_space<vmem>>, vector<32x128xf32>
    %cst = arith.constant dense<0.000000e+00> : vector<8x128xf32>
    %2 = tpu.matmul %0, %1, %cst {dimension_numbers = #tpu.dot_dimension_numbers<[1], [0], [0], [1], [0, 0, 1, 1], [], []>} : vector<8x32xf32>, vector<32x128xf32>, vector<8x128xf32> -> vector<8x128xf32>
    %c0_3 = arith.constant 0 : index
    %c0_4 = arith.constant 0 : index
    %3 = vector.load %arg3[%c0_3, %c0_4] : memref<1x128xf32, #tpu.memory_space<vmem>>, vector<1x128xf32>
    %4 = vector.broadcast %3 : vector<1x128xf32> to vector<8x128xf32>
    %5 = arith.addf %2, %4 : vector<8x128xf32>
    %cst_5 = arith.constant 0.000000e+00 : f32
    %6 = vector.broadcast %cst_5 : f32 to vector<8x128xf32>
    %7 = arith.subf %6, %5 : vector<8x128xf32>
    %8 = math.exp %7 : vector<8x128xf32>
    %cst_6 = arith.constant 1.000000e+00 : f32
    %9 = vector.broadcast %cst_6 : f32 to vector<8x128xf32>
    %10 = arith.addf %9, %8 : vector<8x128xf32>
    %11 = tpu.reciprocal %10 {approx = true} : vector<8x128xf32> -> vector<8x128xf32>
    %c0_7 = arith.constant 0 : index
    %c0_8 = arith.constant 0 : index
    %12 = vector.load %arg4[%c0_7, %c0_8] : memref<8x128xf32, #tpu.memory_space<vmem>>, vector<8x128xf32>
    tpu.vector_store %arg4[%c0_7, %c0_8], %11 {strides = array<i32>} : memref<8x128xf32, #tpu.memory_space<vmem>>, vector<8x128xf32>,
    return
  }
  func.func @transform_0(%arg0: i32) -> (i32, i32) {
    %c0_i32 = arith.constant 0 : i32
    %c0_i32_0 = arith.constant 0 : i32
    return %arg0, %c0_i32 : i32, i32
  }
  func.func @transform_1(%arg0: i32) -> (i32, i32) {
    %c0_i32 = arith.constant 0 : i32
    %c0_i32_0 = arith.constant 0 : i32
    %c0_i32_1 = arith.constant 0 : i32
    return %c0_i32, %c0_i32_0 : i32, i32
  }
  func.func @transform_2(%arg0: i32) -> (i32, i32) {
    %c0_i32 = arith.constant 0 : i32
    %c0_i32_0 = arith.constant 0 : i32
    %c0_i32_1 = arith.constant 0 : i32
    return %c0_i32, %c0_i32_0 : i32, i32
  }
  func.func @transform_3(%arg0: i32) -> (i32, i32) {
    %c0_i32 = arith.constant 0 : i32
    %c0_i32_0 = arith.constant 0 : i32
    return %arg0, %c0_i32 : i32, i32
  }
}

</mosaic_0001>

<llo_original>
// kernel: tpu_custom_call.1
$region0: #{tpu_custom_call.1}
  #allocation0 [shape = 'u32[]', space=smem, size = 0x4, offset = 0x4, fixed_abs, tag = 'smem constant byte address 0x4 - core index']
  #allocation1 [shape = 'u32[144,128]{1,0:T(1,128)}', space=vmem, size = 0x12000, scoped, tag = 'internal scratch']
  %s0 = inlined_call_operand.hbm [shape: f32[8,32], index: 0, kind: input, shape index: {}]
  %s1 = inlined_call_operand.hbm [shape: f32[32,128], index: 1, kind: input, shape index: {}]
  %s2 = inlined_call_operand.vmem [shape: f32[1,128], index: 2, kind: input, shape index: {}]
  %s3 = inlined_call_operand.hbm [shape: f32[8,128], index: 3, kind: output, shape index: {}]
  %s4 = sld [smem:[#allocation0]]
  $region30: #{tpu_custom_call.1} parent=0
    _
  %s6 = ssub.s32 1, %s4
  %s7 = scalar_select 0, %s6, %s4
  $region1: #{tpu_custom_call.1} parent=0
    #allocation2 [shape = 'u8[4096]{0}', space=vmem, size = 0x1000, scoped, tag = 'input window, operand 0, single buffered']
    #allocation3 [shape = 's32[1]{0}', space=sflag, size = 0x4, scoped, tag = 'scoped memory for tpu_custom_call.1']
    #allocation4 [shape = 's32[1]{0}', space=sflag, size = 0x4, scoped, tag = 'scoped memory for tpu_custom_call.1']
    #allocation5 [shape = 'u8[16384]{0}', space=vmem, size = 0x4000, scoped, tag = 'input window, operand 1, single buffered']
    #allocation6 [shape = 's32[1]{0}', space=sflag, size = 0x4, scoped, tag = 'scoped memory for tpu_custom_call.1']
    #allocation7 [shape = 'u8[4096]{0}', space=vmem, size = 0x1000, scoped, tag = 'output window, operand 0, single buffered']
    %8 = vsyncpa [#allocation3], 0
    %9 = vsyncpa [#allocation6], 0
    %10 = vsyncpa [#allocation4], 0
    // Predicated region
    $region2: #{tpu_custom_call.1} parent=1 // pred_check
      _
    $region3: #{tpu_custom_call.1} parent=1 // pred_check_branch
      %12 = sbr.rel (0) target = $region5
    $region4: #{tpu_custom_call.1} parent=1 // pred_region
      %s14 = ssub.s32 128, 128
      %15 = vsyncadd [#allocation3], %s14
      %s17 = sshll.u32 [#allocation2], 4
      %s18 = int_to_ptr.vmem [resolvable:$true] %s17
      %20 = dma.hbm_to_vmem [thread:$0]  %s0, 128, %s18, [#allocation3]
    $region5: #{tpu_custom_call.1} parent=1 // pred_fallthru
      _
    // Predicated region
    $region6: #{tpu_custom_call.1} parent=1 // pred_check
      _
    $region7: #{tpu_custom_call.1} parent=1 // pred_check_branch
      %22 = sbr.rel (0) target = $region9
    $region8: #{tpu_custom_call.1} parent=1 // pred_region
      %s24 = ssub.s32 512, 512
      %25 = vsyncadd [#allocation6], %s24
      %s26 = sshll.u32 [#allocation5], 4
      %s27 = int_to_ptr.vmem [resolvable:$true] %s26
      %32 = dma.hbm_to_vmem [thread:$0]  %s1, 512, %s27, [#allocation6], 128, 128, 8
    $region9: #{tpu_custom_call.1} parent=1 // pred_fallthru
      _
    // Predicated region
    $region10: #{tpu_custom_call.1} parent=1 // pred_check
      _
    $region11: #{tpu_custom_call.1} parent=1 // pred_check_branch
      %34 = sbr.rel (0) target = $region13
    $region12: #{tpu_custom_call.1} parent=1 // pred_region
      _
    $region13: #{tpu_custom_call.1} parent=1 // pred_fallthru
      _
    // Predicated region
    $region14: #{tpu_custom_call.1} parent=1 // pred_check
      _
    $region15: #{tpu_custom_call.1} parent=1 // pred_check_branch
      %36 = sbr.rel (0) target = $region17
    $region16: #{tpu_custom_call.1} parent=1 // pred_region
      %37 = dma.done [#allocation3], 128
    $region17: #{tpu_custom_call.1} parent=1 // pred_fallthru
      _
    // Predicated region
    $region18: #{tpu_custom_call.1} parent=1 // pred_check
      _
    $region19: #{tpu_custom_call.1} parent=1 // pred_check_branch
      %39 = sbr.rel (0) target = $region21
    $region20: #{tpu_custom_call.1} parent=1 // pred_region
      %40 = dma.done [#allocation6], 512
    $region21: #{tpu_custom_call.1} parent=1 // pred_fallthru
      _
    %v41 = vld [vmem:[#allocation2] sm:$0xff]
    %v42 = vld [vmem:[#allocation5] sm:$0xff]
    %v43 = vld [vmem:[#allocation5 + $0x8] sm:$0xff]
    %v44 = vld [vmem:[#allocation5 + $0x10] sm:$0xff]
    %v45 = vld [vmem:[#allocation5 + $0x18] sm:$0xff]
    %v46 = vld [vmem:[%s2] sm:$0x1]
    %v48 = vlaneseq
    %v49 = vshrl.u32 %v48, 7
    %v50 = vsub.s32 0, %v49
    %v51 = vrot.slane %v46, %v50
    %vm53 = vcmask 261120
    %v55 = vsel %vm53, %v41, 0
    %57 = vmatprep.subr.mxu0 0.0
    %58 = vmatpush1.msra.mxu0 0.0
    %59 = vmatprep.subr.mxu0 0.0
    %60 = vmatpush1.msra.mxu0 0.0
    %61 = vmatprep.subr.mxu0 0.0
    %62 = vmatpush1.msra.mxu0 0.0
    %63 = vmatprep.subr.mxu0 0.0
    %64 = vmatpush1.msra.mxu0 0.0
    %65 = vmatprep.subr.mxu0 0.0
    %66 = vmatpush1.msra.mxu0 0.0
    %67 = vmatprep.subr.mxu0 0.0
    %68 = vmatpush1.msra.mxu0 0.0
    %69 = vmatprep.subr.mxu0 0.0
    %70 = vmatpush1.msra.mxu0 0.0
    %71 = vmatprep.subr.mxu0 0.0
    %72 = vmatpush1.msra.mxu0 0.0
    %73 = vmatprep.subr.mxu0 0.0
    %74 = vmatpush1.msra.mxu0 0.0
    %75 = vmatprep.subr.mxu0 0.0
    %76 = vmatpush1.msra.mxu0 0.0
    %77 = vmatprep.subr.mxu0 0.0
    %78 = vmatpush1.msra.mxu0 0.0
    %79 = vmatprep.subr.mxu0 0.0
    %80 = vmatpush1.msra.mxu0 0.0
    %81 = vmatprep.subr.mxu0 0.0
    %82 = vmatpush1.msra.mxu0 %v45
    %83 = vmatprep.subr.mxu0 0.0
    %84 = vmatpush1.msra.mxu0 %v44
    %85 = vmatprep.subr.mxu0 0.0
    %86 = vmatpush1.msra.mxu0 %v43
    %87 = vmatprep.subr.mxu0 0.0
    %88 = vmatpush1.msra.mxu0 %v42
    %89 = vmatprep.subr.mxu0 0.0
    %90 = vmatpush2.msra.mxu0 0.0
    %91 = vmatprep.subr.mxu0 0.0
    %92 = vmatpush2.msra.mxu0 0.0
    %93 = vmatprep.subr.mxu0 0.0
    %94 = vmatpush2.msra.mxu0 0.0
    %95 = vmatprep.subr.mxu0 0.0
    %96 = vmatpush2.msra.mxu0 0.0
    %97 = vmatprep.subr.mxu0 0.0
    %98 = vmatpush2.msra.mxu0 0.0
    %99 = vmatprep.subr.mxu0 0.0
    %100 = vmatpush2.msra.mxu0 0.0
    %101 = vmatprep.subr.mxu0 0.0
    %102 = vmatpush2.msra.mxu0 0.0
    %103 = vmatprep.subr.mxu0 0.0
    %104 = vmatpush2.msra.mxu0 0.0
    %105 = vmatprep.subr.mxu0 0.0
    %106 = vmatpush2.msra.mxu0 0.0
    %107 = vmatprep.subr.mxu0 0.0
    %108 = vmatpush2.msra.mxu0 0.0
    %109 = vmatprep.subr.mxu0 0.0
    %110 = vmatpush2.msra.mxu0 0.0
    %111 = vmatprep.subr.mxu0 0.0
    %112 = vmatpush2.msra.mxu0 0.0
    %113 = vmatprep.subr.mxu0 0.0
    %114 = vmatpush2.msra.mxu0 0.0
    %115 = vmatprep.subr.mxu0 0.0
    %116 = vmatpush2.msra.mxu0 0.0
    %117 = vmatprep.subr.mxu0 0.0
    %118 = vmatpush2.msra.mxu0 0.0
    %119 = vmatprep.subr.mxu0 0.0
    %120 = vmatpush2.msra.mxu0 0.0
    %121 = vmatprep.mubr.f32.mxu0 0.0
    %122 = vmatmul.mubr.f32.gmra.mxu0 %v55
    %v123 = vpop.f32.mrf.mxu0
    %v124 = vadd.f32 %v51, %v123
    %v125 = vpop.f32.mrf.mxu0
    %126 = vdwg.mxu0
    %v127 = vsub.f32 0.0, %v124
    %v128 = vmul.f32 %v127, 1.442695
    %v129 = vpow.pop %v128
    %v130 = vadd.f32 %v129, 1.0
    %v131 = vrcp.pop %v130
    %132 = vst [vmem:[#allocation7] sm:$0xff] %v131
    // Predicated region
    $region22: #{tpu_custom_call.1} parent=1 // pred_check
      _
    $region23: #{tpu_custom_call.1} parent=1 // pred_check_branch
      %134 = sbr.rel (0) target = $region25
    $region24: #{tpu_custom_call.1} parent=1 // pred_region
      %s136 = ssub.s32 128, 128
      %137 = vsyncadd [#allocation4], %s136
      %s139 = sshll.u32 [#allocation7], 4
      %s140 = int_to_ptr.vmem [resolvable:$true] %s139
      %142 = dma.vmem_to_hbm [thread:$0]  %s140, 128, %s3, [#allocation4]
    $region25: #{tpu_custom_call.1} parent=1 // pred_fallthru
      _
    // Predicated region
    $region26: #{tpu_custom_call.1} parent=1 // pred_check
      _
    $region27: #{tpu_custom_call.1} parent=1 // pred_check_branch
      %144 = sbr.rel (0) target = $region29
    $region28: #{tpu_custom_call.1} parent=1 // pred_region
      %145 = dma.done [#allocation4], 128
    $region29: #{tpu_custom_call.1} parent=1 // pred_fallthru
      _
    %146 = vsyncpa [#allocation3], 1
    %147 = vsyncpa [#allocation6], 1
    %148 = vsyncpa [#allocation4], 1

</llo_original>
